<compile_context>
chip_gen: v6e
topology: v6e:2x2x1
jax: 0.10.0
libtpu: 0.0.40
codegen_flags: <defaults>
</compile_context>

<pallas_src>
import functools

import jax
import jax.numpy as jnp
from jax.experimental import pallas as pl
from jax.experimental.pallas import tpu as pltpu

LANE = 128  # TPU lane width: feature dims are padded to multiples of this.


def _round_up(x, m):
    return (x + m - 1) // m * m


def _make_mlp_kernel(n_linear):
    """Fused MLP kernel for `n_linear` linear layers.

    Kernel ref order: x, w0, b0, w1, b1, ..., out
    ReLU after every linear layer except the last (matches the PyTorch
    Sequential); dropout between hidden layers is identity in eval mode.
    """

    def kernel(x_ref, *rest):
        out_ref = rest[-1]
        param_refs = rest[:-1]
        h = x_ref[...].astype(jnp.float32)
        for i in range(n_linear):
            w = param_refs[2 * i][...]               # bf16 (in_pad, out_pad)
            b = param_refs[2 * i + 1][...]           # f32  (1, out_pad)
            # bf16 MXU matmul with f32 accumulation; bias/ReLU in f32 on VPU.
            h = jnp.dot(h.astype(jnp.bfloat16), w,
                        preferred_element_type=jnp.float32) + b
            if i < n_linear - 1:
                h = jnp.maximum(h, 0.0)
        out_ref[...] = h.astype(out_ref.dtype)

    return kernel


def init_mlp_params(key, in_dim, hidden_dim, out_dim, n_layers, dtype=jnp.float32):
    """Init matching nn.Linear shapes (weights pre-transposed to (in, out))."""
    dims = [in_dim] + [hidden_dim] * n_layers + [out_dim]
    params = []
    for i in range(len(dims) - 1):
        fan_in, fan_out = dims[i], dims[i + 1]
        key, kw, kb = jax.random.split(key, 3)
        bound = 1.0 / jnp.sqrt(jnp.array(fan_in, jnp.float32))
        w = jax.random.uniform(kw, (fan_in, fan_out), dtype, -bound, bound)
        b = jax.random.uniform(kb, (fan_out,), dtype, -bound, bound)
        params.extend([w, b])
    return params


@jax.jit
def mlp_forward(x, params):
    """Run the fused MLP Pallas kernel.

    x: (batch, in_dim) float32
    params: flat list [w0, b0, w1, b1, ...]; w_i is (in_f, out_f), b_i is (out_f,)
    """
    n_linear = len(params) // 2
    batch, in_dim = x.shape
    dims = [in_dim] + [params[2 * i].shape[1] for i in range(n_linear)]
    out_dim = dims[-1]
    dims_pad = [_round_up(d, LANE) for d in dims]

    # Batch tile: large enough to amortize per-grid-step overhead, multiple of 8.
    # (Kept modest so resident bf16 weights + double-buffered activation tiles
    #  fit the 32 MiB scoped-VMEM default even on v7x's 64 MiB VMEM.)
    tb = 512 if batch >= 512 else _round_up(batch, 8)
    batch_pad = _round_up(batch, tb)

    # Zero-pad x (batch + feature) and params (features) to lane-dense shapes.
    x_pad = jnp.pad(x, ((0, batch_pad - batch), (0, dims_pad[0] - in_dim)))
    padded_params = []
    for i in range(n_linear):
        w, b = params[2 * i], params[2 * i + 1]
        fin, fout = w.shape
        w_pad = jnp.pad(w, ((0, dims_pad[i] - fin),
                            (0, dims_pad[i + 1] - fout))).astype(jnp.bfloat16)
        b_pad = jnp.pad(b.reshape(1, -1),
                        ((0, 0), (0, dims_pad[i + 1] - fout))).astype(jnp.float32)
        padded_params.extend([w_pad, b_pad])

    kernel = _make_mlp_kernel(n_linear)

    # x / out are tiled over the batch grid; weights & biases use a constant
    # index_map so they are DMA'd once and stay resident in VMEM.
    in_specs = [pl.BlockSpec((tb, dims_pad[0]), lambda i: (i, 0))]
    for li in range(n_linear):
        in_specs.append(
            pl.BlockSpec((dims_pad[li], dims_pad[li + 1]), lambda i: (0, 0)))
        in_specs.append(
            pl.BlockSpec((1, dims_pad[li + 1]), lambda i: (0, 0)))
    out_spec = pl.BlockSpec((tb, dims_pad[-1]), lambda i: (i, 0))

    out_pad = pl.pallas_call(
        kernel,
        out_shape=jax.ShapeDtypeStruct((batch_pad, dims_pad[-1]), x.dtype),
        grid=(batch_pad // tb,),
        in_specs=in_specs,
        out_specs=out_spec,
        compiler_params=pltpu.CompilerParams(
            dimension_semantics=("parallel",),
        ),
    )(x_pad, *padded_params)

    return out_pad[:batch, :out_dim]


def mlp_reference(x, params):
    """Pure-JAX reference mirroring the kernel's bf16-matmul / f32-accumulate."""
    n_linear = len(params) // 2
    h = x.astype(jnp.float32)
    for i in range(n_linear):
        w = params[2 * i].astype(jnp.bfloat16).astype(jnp.float32)
        b = params[2 * i + 1].astype(jnp.float32)
        h = h.astype(jnp.bfloat16).astype(jnp.float32) @ w + b
        if i < n_linear - 1:
            h = jnp.maximum(h, 0.0)
    return h


if __name__ == "__main__":
    # Small shapes consistent with the module: NN(in_dim=16, hidden_dim=32,
    # out_dim=8, n_layers=3), batch=8.
    in_dim, hidden_dim, out_dim, n_layers = 16, 32, 8, 3
    batch = 8

    key = jax.random.PRNGKey(0)
    key, kx = jax.random.split(key)
    x = jax.random.normal(kx, (batch, in_dim), jnp.float32)
    params = init_mlp_params(key, in_dim, hidden_dim, out_dim, n_layers)

    out = mlp_forward(x, params)
    out = jax.block_until_ready(out)

    ref = mlp_reference(x, params)
    assert out.shape == (batch, out_dim), out.shape
    assert jnp.allclose(out, ref, atol=1e-3, rtol=1e-3), "mismatch vs reference"

    print("KERNEL_OK")
</pallas_src>

<mosaic_0001>
module attributes {stable_mosaic.version = 11 : i64} {
  func.func @kernel(%arg0: i32, %arg1: memref<8x128xf32, #tpu.memory_space<vmem>>, %arg2: memref<128x128xbf16, #tpu.memory_space<vmem>>, %arg3: memref<1x128xf32, #tpu.memory_space<vmem>>, %arg4: memref<128x128xbf16, #tpu.memory_space<vmem>>, %arg5: memref<1x128xf32, #tpu.memory_space<vmem>>, %arg6: memref<128x128xbf16, #tpu.memory_space<vmem>>, %arg7: memref<1x128xf32, #tpu.memory_space<vmem>>, %arg8: memref<128x128xbf16, #tpu.memory_space<vmem>>, %arg9: memref<1x128xf32, #tpu.memory_space<vmem>>, %arg10: memref<8x128xf32, #tpu.memory_space<vmem>>) attributes {dimension_semantics = [#tpu.dimension_semantics<parallel>], iteration_bounds = array<i64: 1>, scalar_prefetch = 0 : i64, scratch_operands = 0 : i64, tpu.core_type = #tpu.core_type<tc>, window_params = [{transform_indices = @transform_0, window_bounds = array<i64: 8, 128>}, {pipeline_mode = #tpu.pipeline_mode<synchronous>, transform_indices = @transform_1, window_bounds = array<i64: 128, 128>}, {pipeline_mode = #tpu.pipeline_mode<synchronous>, transform_indices = @transform_2, window_bounds = array<i64: 1, 128>}, {pipeline_mode = #tpu.pipeline_mode<synchronous>, transform_indices = @transform_3, window_bounds = array<i64: 128, 128>}, {pipeline_mode = #tpu.pipeline_mode<synchronous>, transform_indices = @transform_4, window_bounds = array<i64: 1, 128>}, {pipeline_mode = #tpu.pipeline_mode<synchronous>, transform_indices = @transform_5, window_bounds = array<i64: 128, 128>}, {pipeline_mode = #tpu.pipeline_mode<synchronous>, transform_indices = @transform_6, window_bounds = array<i64: 1, 128>}, {pipeline_mode = #tpu.pipeline_mode<synchronous>, transform_indices = @transform_7, window_bounds = array<i64: 128, 128>}, {pipeline_mode = #tpu.pipeline_mode<synchronous>, transform_indices = @transform_8, window_bounds = array<i64: 1, 128>}, {transform_indices = @transform_9, window_bounds = array<i64: 8, 128>}]} {
    %c0 = arith.constant 0 : index
    %c0_0 = arith.constant 0 : index
    %0 = vector.load %arg1[%c0, %c0_0] : memref<8x128xf32, #tpu.memory_space<vmem>>, vector<8x128xf32>
    %c0_1 = arith.constant 0 : index
    %c0_2 = arith.constant 0 : index
    %1 = vector.load %arg2[%c0_1, %c0_2] : memref<128x128xbf16, #tpu.memory_space<vmem>>, vector<128x128xbf16>
    %c0_3 = arith.constant 0 : index
    %c0_4 = arith.constant 0 : index
    %2 = vector.load %arg3[%c0_3, %c0_4] : memref<1x128xf32, #tpu.memory_space<vmem>>, vector<1x128xf32>
    %3 = arith.truncf %0 : vector<8x128xf32> to vector<8x128xbf16>
    %cst = arith.constant dense<0.000000e+00> : vector<8x128xf32>
    %4 = tpu.matmul %3, %1, %cst {dimension_numbers = #tpu.dot_dimension_numbers<[1], [0], [0], [1], [0, 0, 1, 1], [], []>} : vector<8x128xbf16>, vector<128x128xbf16>, vector<8x128xf32> -> vector<8x128xf32>
    %5 = vector.broadcast %2 : vector<1x128xf32> to vector<8x128xf32>
    %6 = arith.addf %4, %5 : vector<8x128xf32>
    %cst_5 = arith.constant 0.000000e+00 : f32
    %7 = vector.broadcast %cst_5 : f32 to vector<8x128xf32>
    %8 = arith.maximumf %6, %7 : vector<8x128xf32>
    %c0_6 = arith.constant 0 : index
    %c0_7 = arith.constant 0 : index
    %9 = vector.load %arg4[%c0_6, %c0_7] : memref<128x128xbf16, #tpu.memory_space<vmem>>, vector<128x128xbf16>
    %c0_8 = arith.constant 0 : index
    %c0_9 = arith.constant 0 : index
    %10 = vector.load %arg5[%c0_8, %c0_9] : memref<1x128xf32, #tpu.memory_space<vmem>>, vector<1x128xf32>
    %11 = arith.truncf %8 : vector<8x128xf32> to vector<8x128xbf16>
    %cst_10 = arith.constant dense<0.000000e+00> : vector<8x128xf32>
    %12 = tpu.matmul %11, %9, %cst_10 {dimension_numbers = #tpu.dot_dimension_numbers<[1], [0], [0], [1], [0, 0, 1, 1], [], []>} : vector<8x128xbf16>, vector<128x128xbf16>, vector<8x128xf32> -> vector<8x128xf32>
    %13 = vector.broadcast %10 : vector<1x128xf32> to vector<8x128xf32>
    %14 = arith.addf %12, %13 : vector<8x128xf32>
    %cst_11 = arith.constant 0.000000e+00 : f32
    %15 = vector.broadcast %cst_11 : f32 to vector<8x128xf32>
    %16 = arith.maximumf %14, %15 : vector<8x128xf32>
    %c0_12 = arith.constant 0 : index
    %c0_13 = arith.constant 0 : index
    %17 = vector.load %arg6[%c0_12, %c0_13] : memref<128x128xbf16, #tpu.memory_space<vmem>>, vector<128x128xbf16>
    %c0_14 = arith.constant 0 : index
    %c0_15 = arith.constant 0 : index
    %18 = vector.load %arg7[%c0_14, %c0_15] : memref<1x128xf32, #tpu.memory_space<vmem>>, vector<1x128xf32>
    %19 = arith.truncf %16 : vector<8x128xf32> to vector<8x128xbf16>
    %cst_16 = arith.constant dense<0.000000e+00> : vector<8x128xf32>
    %20 = tpu.matmul %19, %17, %cst_16 {dimension_numbers = #tpu.dot_dimension_numbers<[1], [0], [0], [1], [0, 0, 1, 1], [], []>} : vector<8x128xbf16>, vector<128x128xbf16>, vector<8x128xf32> -> vector<8x128xf32>
    %21 = vector.broadcast %18 : vector<1x128xf32> to vector<8x128xf32>
    %22 = arith.addf %20, %21 : vector<8x128xf32>
    %cst_17 = arith.constant 0.000000e+00 : f32
    %23 = vector.broadcast %cst_17 : f32 to vector<8x128xf32>
    %24 = arith.maximumf %22, %23 : vector<8x128xf32>
    %c0_18 = arith.constant 0 : index
    %c0_19 = arith.constant 0 : index
    %25 = vector.load %arg8[%c0_18, %c0_19] : memref<128x128xbf16, #tpu.memory_space<vmem>>, vector<128x128xbf16>
    %c0_20 = arith.constant 0 : index
    %c0_21 = arith.constant 0 : index
    %26 = vector.load %arg9[%c0_20, %c0_21] : memref<1x128xf32, #tpu.memory_space<vmem>>, vector<1x128xf32>
    %27 = arith.truncf %24 : vector<8x128xf32> to vector<8x128xbf16>
    %cst_22 = arith.constant dense<0.000000e+00> : vector<8x128xf32>
    %28 = tpu.matmul %27, %25, %cst_22 {dimension_numbers = #tpu.dot_dimension_numbers<[1], [0], [0], [1], [0, 0, 1, 1], [], []>} : vector<8x128xbf16>, vector<128x128xbf16>, vector<8x128xf32> -> vector<8x128xf32>
    %29 = vector.broadcast %26 : vector<1x128xf32> to vector<8x128xf32>
    %30 = arith.addf %28, %29 : vector<8x128xf32>
    %c0_23 = arith.constant 0 : index
    %c0_24 = arith.constant 0 : index
    %31 = vector.load %arg10[%c0_23, %c0_24] : memref<8x128xf32, #tpu.memory_space<vmem>>, vector<8x128xf32>
    tpu.vector_store %arg10[%c0_23, %c0_24], %30 {strides = array<i32>} : memref<8x128xf32, #tpu.memory_space<vmem>>, vector<8x128xf32>,
    return
  }
  func.func @transform_0(%arg0: i32) -> (i32, i32) {
    %c0_i32 = arith.constant 0 : i32
    %c0_i32_0 = arith.constant 0 : i32
    return %arg0, %c0_i32 : i32, i32
  }
  func.func @transform_1(%arg0: i32) -> (i32, i32) {
    %c0_i32 = arith.constant 0 : i32
    %c0_i32_0 = arith.constant 0 : i32
    %c0_i32_1 = arith.constant 0 : i32
    return %c0_i32, %c0_i32_0 : i32, i32
  }
  func.func @transform_2(%arg0: i32) -> (i32, i32) {
    %c0_i32 = arith.constant 0 : i32
    %c0_i32_0 = arith.constant 0 : i32
    %c0_i32_1 = arith.constant 0 : i32
    return %c0_i32, %c0_i32_0 : i32, i32
  }
  func.func @transform_3(%arg0: i32) -> (i32, i32) {
    %c0_i32 = arith.constant 0 : i32
    %c0_i32_0 = arith.constant 0 : i32
    %c0_i32_1 = arith.constant 0 : i32
    return %c0_i32, %c0_i32_0 : i32, i32
  }
  func.func @transform_4(%arg0: i32) -> (i32, i32) {
    %c0_i32 = arith.constant 0 : i32
    %c0_i32_0 = arith.constant 0 : i32
    %c0_i32_1 = arith.constant 0 : i32
    return %c0_i32, %c0_i32_0 : i32, i32
  }
  func.func @transform_5(%arg0: i32) -> (i32, i32) {
    %c0_i32 = arith.constant 0 : i32
    %c0_i32_0 = arith.constant 0 : i32
    %c0_i32_1 = arith.constant 0 : i32
    return %c0_i32, %c0_i32_0 : i32, i32
  }
  func.func @transform_6(%arg0: i32) -> (i32, i32) {
    %c0_i32 = arith.constant 0 : i32
    %c0_i32_0 = arith.constant 0 : i32
    %c0_i32_1 = arith.constant 0 : i32
    return %c0_i32, %c0_i32_0 : i32, i32
  }
  func.func @transform_7(%arg0: i32) -> (i32, i32) {
    %c0_i32 = arith.constant 0 : i32
    %c0_i32_0 = arith.constant 0 : i32
    %c0_i32_1 = arith.constant 0 : i32
    return %c0_i32, %c0_i32_0 : i32, i32
  }
  func.func @transform_8(%arg0: i32) -> (i32, i32) {
    %c0_i32 = arith.constant 0 : i32
    %c0_i32_0 = arith.constant 0 : i32
    %c0_i32_1 = arith.constant 0 : i32
    return %c0_i32, %c0_i32_0 : i32, i32
  }
  func.func @transform_9(%arg0: i32) -> (i32, i32) {
    %c0_i32 = arith.constant 0 : i32
    %c0_i32_0 = arith.constant 0 : i32
    return %arg0, %c0_i32 : i32, i32
  }
}

</mosaic_0001>

<llo_original>
// kernel: mlp_forward.1
$region0: #{mlp_forward.1}
  #allocation0 [shape = 'u32[]', space=smem, size = 0x4, offset = 0x4, fixed_abs, tag = 'smem constant byte address 0x4 - core index']
  #allocation1 [shape = 'u32[144,128]{1,0:T(1,128)}', space=vmem, size = 0x12000, scoped, tag = 'internal scratch']
  %s0 = inlined_call_operand.vmem [shape: f32[8,128], index: 0, kind: input, shape index: {}]
  %s1 = inlined_call_operand.vmem [shape: bf16[128,128], index: 1, kind: input, shape index: {}]
  %s2 = inlined_call_operand.vmem [shape: f32[1,128], index: 2, kind: input, shape index: {}]
  %s3 = inlined_call_operand.vmem [shape: bf16[128,128], index: 3, kind: input, shape index: {}]
  %s4 = inlined_call_operand.vmem [shape: f32[1,128], index: 4, kind: input, shape index: {}]
  %s5 = inlined_call_operand.vmem [shape: bf16[128,128], index: 5, kind: input, shape index: {}]
  %s6 = inlined_call_operand.vmem [shape: f32[1,128], index: 6, kind: input, shape index: {}]
  %s7 = inlined_call_operand.vmem [shape: bf16[128,128], index: 7, kind: input, shape index: {}]
  %s8 = inlined_call_operand.vmem [shape: f32[1,128], index: 8, kind: input, shape index: {}]
  %s9 = inlined_call_operand.hbm [shape: f32[8,128], index: 9, kind: output, shape index: {}]
  %s10 = sld [smem:[#allocation0]]
  $region46: #{mlp_forward.1} parent=0
    _
  %s12 = ssub.s32 1, %s10
  %s13 = scalar_select 0, %s12, %s10
  $region1: #{mlp_forward.1} parent=0
    #allocation2 [shape = 'u8[4096]{0}', space=vmem, size = 0x1000, scoped, tag = 'output window, operand 0, single buffered']
    #allocation3 [shape = 's32[1]{0}', space=sflag, size = 0x4, scoped, tag = 'scoped memory for mlp_forward.1']
    %14 = vsyncpa [#allocation3], 0
    // Predicated region
    $region2: #{mlp_forward.1} parent=1 // pred_check
      _
    $region3: #{mlp_forward.1} parent=1 // pred_check_branch
      %16 = sbr.rel (0) target = $region5
    $region4: #{mlp_forward.1} parent=1 // pred_region
      _
    $region5: #{mlp_forward.1} parent=1 // pred_fallthru
      _
    // Predicated region
    $region6: #{mlp_forward.1} parent=1 // pred_check
      _
    $region7: #{mlp_forward.1} parent=1 // pred_check_branch
      %18 = sbr.rel (0) target = $region9
    $region8: #{mlp_forward.1} parent=1 // pred_region
      _
    $region9: #{mlp_forward.1} parent=1 // pred_fallthru
      _
    // Predicated region
    $region10: #{mlp_forward.1} parent=1 // pred_check
      _
    $region11: #{mlp_forward.1} parent=1 // pred_check_branch
      %20 = sbr.rel (0) target = $region13
    $region12: #{mlp_forward.1} parent=1 // pred_region
      _
    $region13: #{mlp_forward.1} parent=1 // pred_fallthru
      _
    // Predicated region
    $region14: #{mlp_forward.1} parent=1 // pred_check
      _
    $region15: #{mlp_forward.1} parent=1 // pred_check_branch
      %22 = sbr.rel (0) target = $region17
    $region16: #{mlp_forward.1} parent=1 // pred_region
      _
    $region17: #{mlp_forward.1} parent=1 // pred_fallthru
      _
    // Predicated region
    $region18: #{mlp_forward.1} parent=1 // pred_check
      _
    $region19: #{mlp_forward.1} parent=1 // pred_check_branch
      %24 = sbr.rel (0) target = $region21
    $region20: #{mlp_forward.1} parent=1 // pred_region
      _
    $region21: #{mlp_forward.1} parent=1 // pred_fallthru
      _
    // Predicated region
    $region22: #{mlp_forward.1} parent=1 // pred_check
      _
    $region23: #{mlp_forward.1} parent=1 // pred_check_branch
      %26 = sbr.rel (0) target = $region25
    $region24: #{mlp_forward.1} parent=1 // pred_region
      _
    $region25: #{mlp_forward.1} parent=1 // pred_fallthru
      _
    // Predicated region
    $region26: #{mlp_forward.1} parent=1 // pred_check
      _
    $region27: #{mlp_forward.1} parent=1 // pred_check_branch
      %28 = sbr.rel (0) target = $region29
    $region28: #{mlp_forward.1} parent=1 // pred_region
      _
    $region29: #{mlp_forward.1} parent=1 // pred_fallthru
      _
    // Predicated region
    $region30: #{mlp_forward.1} parent=1 // pred_check
      _
    $region31: #{mlp_forward.1} parent=1 // pred_check_branch
      %30 = sbr.rel (0) target = $region33
    $region32: #{mlp_forward.1} parent=1 // pred_region
      _
    $region33: #{mlp_forward.1} parent=1 // pred_fallthru
      _
    // Predicated region
    $region34: #{mlp_forward.1} parent=1 // pred_check
      _
    $region35: #{mlp_forward.1} parent=1 // pred_check_branch
      %32 = sbr.rel (0) target = $region37
    $region36: #{mlp_forward.1} parent=1 // pred_region
      _
    $region37: #{mlp_forward.1} parent=1 // pred_fallthru
      _
    %v34 = vld [vmem:[%s0] sm:$0xff]
    %v35 = vld [vmem:[%s1] sm:$0xf]
    %v36 = vld [vmem:[%s1 + $0x4] sm:$0xf]
    %v37 = vld [vmem:[%s1 + $0x8] sm:$0xf]
    %v38 = vld [vmem:[%s1 + $0xc] sm:$0xf]
    %v39 = vld [vmem:[%s1 + $0x10] sm:$0xf]
    %v40 = vld [vmem:[%s1 + $0x14] sm:$0xf]
    %v41 = vld [vmem:[%s1 + $0x18] sm:$0xf]
    %v42 = vld [vmem:[%s1 + $0x1c] sm:$0xf]
    %v43 = vld [vmem:[%s1 + $0x20] sm:$0xf]
    %v44 = vld [vmem:[%s1 + $0x24] sm:$0xf]
    %v45 = vld [vmem:[%s1 + $0x28] sm:$0xf]
    %v46 = vld [vmem:[%s1 + $0x2c] sm:$0xf]
    %v47 = vld [vmem:[%s1 + $0x30] sm:$0xf]
    %v48 = vld [vmem:[%s1 + $0x34] sm:$0xf]
    %v49 = vld [vmem:[%s1 + $0x38] sm:$0xf]
    %v50 = vld [vmem:[%s1 + $0x3c] sm:$0xf]
    %v51 = vld [vmem:[%s2] sm:$0x1]
    %v52 = vpack.c.bf16 %v34, %v34
    %v54 = vlaneseq
    %v55 = vshrl.u32 %v54, 7
    %v56 = vsub.s32 0, %v55
    %v57 = vrot.slane %v51, %v56
    %v75 = vunpack.c.l.b16 %v35
    %v76 = vunpack.c.l.b16 %v36
    %v77 = vunpack.c.l.b16 %v37
    %v78 = vunpack.c.l.b16 %v38
    %v79 = vunpack.c.l.b16 %v39
    %v80 = vunpack.c.l.b16 %v40
    %v81 = vunpack.c.l.b16 %v41
    %v82 = vunpack.c.l.b16 %v42
    %v83 = vunpack.c.l.b16 %v43
    %v84 = vunpack.c.l.b16 %v44
    %v85 = vunpack.c.l.b16 %v45
    %v86 = vunpack.c.l.b16 %v46
    %v87 = vunpack.c.l.b16 %v47
    %v88 = vunpack.c.l.b16 %v48
    %v89 = vunpack.c.l.b16 %v49
    %v90 = vunpack.c.l.b16 %v50
    %v91 = vpack.c.b16 %v76, %v75
    %v92 = vpack.c.b16 %v78, %v77
    %v93 = vpack.c.b16 %v80, %v79
    %v94 = vpack.c.b16 %v82, %v81
    %v95 = vpack.c.b16 %v84, %v83
    %v96 = vpack.c.b16 %v86, %v85
    %v97 = vpack.c.b16 %v88, %v87
    %v98 = vpack.c.b16 %v90, %v89
    %107 = vmatprep.subr.bf16.mxu0 0
    %108 = vmatpush1.bf16.msra.mxu0 %v98
    %109 = vmatprep.subr.bf16.mxu0 0
    %110 = vmatpush1.bf16.msra.mxu0 %v97
    %111 = vmatprep.subr.bf16.mxu0 0
    %112 = vmatpush1.bf16.msra.mxu0 %v96
    %113 = vmatprep.subr.bf16.mxu0 0
    %114 = vmatpush1.bf16.msra.mxu0 %v95
    %115 = vmatprep.subr.bf16.mxu0 0
    %116 = vmatpush1.bf16.msra.mxu0 %v94
    %117 = vmatprep.subr.bf16.mxu0 0
    %118 = vmatpush1.bf16.msra.mxu0 %v93
    %119 = vmatprep.subr.bf16.mxu0 0
    %120 = vmatpush1.bf16.msra.mxu0 %v92
    %121 = vmatprep.subr.bf16.mxu0 0
    %122 = vmatpush1.bf16.msra.mxu0 %v91
    %123 = vmatprep.subr.bf16.mxu0 0
    %124 = vmatpush2.bf16.msra.mxu0 0
    %125 = vmatprep.subr.bf16.mxu0 0
    %126 = vmatpush2.bf16.msra.mxu0 0
    %127 = vmatprep.subr.bf16.mxu0 0
    %128 = vmatpush2.bf16.msra.mxu0 0
    %129 = vmatprep.subr.bf16.mxu0 0
    %130 = vmatpush2.bf16.msra.mxu0 0
    %131 = vmatprep.subr.bf16.mxu0 0
    %132 = vmatpush2.bf16.msra.mxu0 0
    %133 = vmatprep.subr.bf16.mxu0 0
    %134 = vmatpush2.bf16.msra.mxu0 0
    %135 = vmatprep.subr.bf16.mxu0 0
    %136 = vmatpush2.bf16.msra.mxu0 0
    %137 = vmatprep.subr.bf16.mxu0 0
    %138 = vmatpush2.bf16.msra.mxu0 0
    %139 = vmatprep.mubr.bf16.mxu0 0
    %140 = vmatmul.mubr.bf16.gmra.mxu0 %v52
    %v141 = vpop.f32.mrf.mxu0
    %v142 = vadd.f32 %v57, %v141
    %v143 = vpop.f32.mrf.mxu0
    %v144 = vpop.f32.mrf.mxu0
    %v145 = vpop.f32.mrf.mxu0
    %146 = vdwg.mxu0
    %v147 = vmax.f32 %v142, 0.0
    %v148 = vld [vmem:[%s3] sm:$0xf]
    %v149 = vld [vmem:[%s3 + $0x4] sm:$0xf]
    %v150 = vld [vmem:[%s3 + $0x8] sm:$0xf]
    %v151 = vld [vmem:[%s3 + $0xc] sm:$0xf]
    %v152 = vld [vmem:[%s3 + $0x10] sm:$0xf]
    %v153 = vld [vmem:[%s3 + $0x14] sm:$0xf]
    %v154 = vld [vmem:[%s3 + $0x18] sm:$0xf]
    %v155 = vld [vmem:[%s3 + $0x1c] sm:$0xf]
    %v156 = vld [vmem:[%s3 + $0x20] sm:$0xf]
    %v157 = vld [vmem:[%s3 + $0x24] sm:$0xf]
    %v158 = vld [vmem:[%s3 + $0x28] sm:$0xf]
    %v159 = vld [vmem:[%s3 + $0x2c] sm:$0xf]
    %v160 = vld [vmem:[%s3 + $0x30] sm:$0xf]
    %v161 = vld [vmem:[%s3 + $0x34] sm:$0xf]
    %v162 = vld [vmem:[%s3 + $0x38] sm:$0xf]
    %v163 = vld [vmem:[%s3 + $0x3c] sm:$0xf]
    %v164 = vld [vmem:[%s4] sm:$0x1]
    %v165 = vpack.c.bf16 %v147, %v147
    %v167 = vlaneseq
    %v168 = vshrl.u32 %v167, 7
    %v169 = vsub.s32 0, %v168
    %v170 = vrot.slane %v164, %v169
    %v188 = vunpack.c.l.b16 %v148
    %v189 = vunpack.c.l.b16 %v149
    %v190 = vunpack.c.l.b16 %v150
    %v191 = vunpack.c.l.b16 %v151
    %v192 = vunpack.c.l.b16 %v152
    %v193 = vunpack.c.l.b16 %v153
    %v194 = vunpack.c.l.b16 %v154
    %v195 = vunpack.c.l.b16 %v155
    %v196 = vunpack.c.l.b16 %v156
    %v197 = vunpack.c.l.b16 %v157
    %v198 = vunpack.c.l.b16 %v158
    %v199 = vunpack.c.l.b16 %v159
    %v200 = vunpack.c.l.b16 %v160
    %v201 = vunpack.c.l.b16 %v161
    %v202 = vunpack.c.l.b16 %v162
    %v203 = vunpack.c.l.b16 %v163
    %v204 = vpack.c.b16 %v189, %v188
    %v205 = vpack.c.b16 %v191, %v190
    %v206 = vpack.c.b16 %v193, %v192
    %v207 = vpack.c.b16 %v195, %v194
    %v208 = vpack.c.b16 %v197, %v196
    %v209 = vpack.c.b16 %v199, %v198
    %v210 = vpack.c.b16 %v201, %v200
    %v211 = vpack.c.b16 %v203, %v202
    %220 = vmatprep.subr.bf16.mxu0 0
    %221 = vmatpush1.bf16.msra.mxu0 %v211
    %222 = vmatprep.subr.bf16.mxu0 0
    %223 = vmatpush1.bf16.msra.mxu0 %v210
    %224 = vmatprep.subr.bf16.mxu0 0
    %225 = vmatpush1.bf16.msra.mxu0 %v209
    %226 = vmatprep.subr.bf16.mxu0 0
    %227 = vmatpush1.bf16.msra.mxu0 %v208
    %228 = vmatprep.subr.bf16.mxu0 0
    %229 = vmatpush1.bf16.msra.mxu0 %v207
    %230 = vmatprep.subr.bf16.mxu0 0
    %231 = vmatpush1.bf16.msra.mxu0 %v206
    %232 = vmatprep.subr.bf16.mxu0 0
    %233 = vmatpush1.bf16.msra.mxu0 %v205
    %234 = vmatprep.subr.bf16.mxu0 0
    %235 = vmatpush1.bf16.msra.mxu0 %v204
    %236 = vmatprep.subr.bf16.mxu0 0
    %237 = vmatpush2.bf16.msra.mxu0 0
    %238 = vmatprep.subr.bf16.mxu0 0
    %239 = vmatpush2.bf16.msra.mxu0 0
    %240 = vmatprep.subr.bf16.mxu0 0
    %241 = vmatpush2.bf16.msra.mxu0 0
    %242 = vmatprep.subr.bf16.mxu0 0
    %243 = vmatpush2.bf16.msra.mxu0 0
    %244 = vmatprep.subr.bf16.mxu0 0
    %245 = vmatpush2.bf16.msra.mxu0 0
    %246 = vmatprep.subr.bf16.mxu0 0
    %247 = vmatpush2.bf16.msra.mxu0 0
    %248 = vmatprep.subr.bf16.mxu0 0
    %249 = vmatpush2.bf16.msra.mxu0 0
    %250 = vmatprep.subr.bf16.mxu0 0
    %251 = vmatpush2.bf16.msra.mxu0 0
    %252 = vmatprep.mubr.bf16.mxu0 0
    %253 = vmatmul.mubr.bf16.gmra.mxu0 %v165
    %v254 = vpop.f32.mrf.mxu0
    %v255 = vadd.f32 %v170, %v254
    %v256 = vpop.f32.mrf.mxu0
    %v257 = vpop.f32.mrf.mxu0
    %v258 = vpop.f32.mrf.mxu0
    %259 = vdwg.mxu0
    %v260 = vmax.f32 %v255, 0.0
    %v261 = vld [vmem:[%s5] sm:$0xf]
    %v262 = vld [vmem:[%s5 + $0x4] sm:$0xf]
    %v263 = vld [vmem:[%s5 + $0x8] sm:$0xf]
    %v264 = vld [vmem:[%s5 + $0xc] sm:$0xf]
    %v265 = vld [vmem:[%s5 + $0x10] sm:$0xf]
    %v266 = vld [vmem:[%s5 + $0x14] sm:$0xf]
    %v267 = vld [vmem:[%s5 + $0x18] sm:$0xf]
    %v268 = vld [vmem:[%s5 + $0x1c] sm:$0xf]
    %v269 = vld [vmem:[%s5 + $0x20] sm:$0xf]
    %v270 = vld [vmem:[%s5 + $0x24] sm:$0xf]
    %v271 = vld [vmem:[%s5 + $0x28] sm:$0xf]
    %v272 = vld [vmem:[%s5 + $0x2c] sm:$0xf]
    %v273 = vld [vmem:[%s5 + $0x30] sm:$0xf]
    %v274 = vld [vmem:[%s5 + $0x34] sm:$0xf]
    %v275 = vld [vmem:[%s5 + $0x38] sm:$0xf]
    %v276 = vld [vmem:[%s5 + $0x3c] sm:$0xf]
    %v277 = vld [vmem:[%s6] sm:$0x1]
    %v278 = vpack.c.bf16 %v260, %v260
    %v280 = vlaneseq
    %v281 = vshrl.u32 %v280, 7
    %v282 = vsub.s32 0, %v281
    %v283 = vrot.slane %v277, %v282
    %v301 = vunpack.c.l.b16 %v261
    %v302 = vunpack.c.l.b16 %v262
    %v303 = vunpack.c.l.b16 %v263
    %v304 = vunpack.c.l.b16 %v264
    %v305 = vunpack.c.l.b16 %v265
    %v306 = vunpack.c.l.b16 %v266
    %v307 = vunpack.c.l.b16 %v267
    %v308 = vunpack.c.l.b16 %v268
    %v309 = vunpack.c.l.b16 %v269
    %v310 = vunpack.c.l.b16 %v270
    %v311 = vunpack.c.l.b16 %v271
    %v312 = vunpack.c.l.b16 %v272
    %v313 = vunpack.c.l.b16 %v273
    %v314 = vunpack.c.l.b16 %v274
    %v315 = vunpack.c.l.b16 %v275
    %v316 = vunpack.c.l.b16 %v276
    %v317 = vpack.c.b16 %v302, %v301
    %v318 = vpack.c.b16 %v304, %v303
    %v319 = vpack.c.b16 %v306, %v305
    %v320 = vpack.c.b16 %v308, %v307
    %v321 = vpack.c.b16 %v310, %v309
    %v322 = vpack.c.b16 %v312, %v311
    %v323 = vpack.c.b16 %v314, %v313
    %v324 = vpack.c.b16 %v316, %v315
    %333 = vmatprep.subr.bf16.mxu0 0
    %334 = vmatpush1.bf16.msra.mxu0 %v324
    %335 = vmatprep.subr.bf16.mxu0 0
    %336 = vmatpush1.bf16.msra.mxu0 %v323
    %337 = vmatprep.subr.bf16.mxu0 0
    %338 = vmatpush1.bf16.msra.mxu0 %v322
    %339 = vmatprep.subr.bf16.mxu0 0
    %340 = vmatpush1.bf16.msra.mxu0 %v321
    %341 = vmatprep.subr.bf16.mxu0 0
    %342 = vmatpush1.bf16.msra.mxu0 %v320
    %343 = vmatprep.subr.bf16.mxu0 0
    %344 = vmatpush1.bf16.msra.mxu0 %v319
    %345 = vmatprep.subr.bf16.mxu0 0
    %346 = vmatpush1.bf16.msra.mxu0 %v318
    %347 = vmatprep.subr.bf16.mxu0 0
    %348 = vmatpush1.bf16.msra.mxu0 %v317
    %349 = vmatprep.subr.bf16.mxu0 0
    %350 = vmatpush2.bf16.msra.mxu0 0
    %351 = vmatprep.subr.bf16.mxu0 0
    %352 = vmatpush2.bf16.msra.mxu0 0
    %353 = vmatprep.subr.bf16.mxu0 0
    %354 = vmatpush2.bf16.msra.mxu0 0
    %355 = vmatprep.subr.bf16.mxu0 0
    %356 = vmatpush2.bf16.msra.mxu0 0
    %357 = vmatprep.subr.bf16.mxu0 0
    %358 = vmatpush2.bf16.msra.mxu0 0
    %359 = vmatprep.subr.bf16.mxu0 0
    %360 = vmatpush2.bf16.msra.mxu0 0
    %361 = vmatprep.subr.bf16.mxu0 0
    %362 = vmatpush2.bf16.msra.mxu0 0
    %363 = vmatprep.subr.bf16.mxu0 0
    %364 = vmatpush2.bf16.msra.mxu0 0
    %365 = vmatprep.mubr.bf16.mxu0 0
    %366 = vmatmul.mubr.bf16.gmra.mxu0 %v278
    %v367 = vpop.f32.mrf.mxu0
    %v368 = vadd.f32 %v283, %v367
    %v369 = vpop.f32.mrf.mxu0
    %v370 = vpop.f32.mrf.mxu0
    %v371 = vpop.f32.mrf.mxu0
    %372 = vdwg.mxu0
    %v373 = vmax.f32 %v368, 0.0
    %v374 = vld [vmem:[%s7] sm:$0xf]
    %v375 = vld [vmem:[%s7 + $0x4] sm:$0xf]
    %v376 = vld [vmem:[%s7 + $0x8] sm:$0xf]
    %v377 = vld [vmem:[%s7 + $0xc] sm:$0xf]
    %v378 = vld [vmem:[%s7 + $0x10] sm:$0xf]
    %v379 = vld [vmem:[%s7 + $0x14] sm:$0xf]
    %v380 = vld [vmem:[%s7 + $0x18] sm:$0xf]
    %v381 = vld [vmem:[%s7 + $0x1c] sm:$0xf]
    %v382 = vld [vmem:[%s7 + $0x20] sm:$0xf]
    %v383 = vld [vmem:[%s7 + $0x24] sm:$0xf]
    %v384 = vld [vmem:[%s7 + $0x28] sm:$0xf]
    %v385 = vld [vmem:[%s7 + $0x2c] sm:$0xf]
    %v386 = vld [vmem:[%s7 + $0x30] sm:$0xf]
    %v387 = vld [vmem:[%s7 + $0x34] sm:$0xf]
    %v388 = vld [vmem:[%s7 + $0x38] sm:$0xf]
    %v389 = vld [vmem:[%s7 + $0x3c] sm:$0xf]
    %v390 = vld [vmem:[%s8] sm:$0x1]
    %v391 = vpack.c.bf16 %v373, %v373
    %v393 = vlaneseq
    %v394 = vshrl.u32 %v393, 7
    %v395 = vsub.s32 0, %v394
    %v396 = vrot.slane %v390, %v395
    %v414 = vunpack.c.l.b16 %v374
    %v415 = vunpack.c.l.b16 %v375
    %v416 = vunpack.c.l.b16 %v376
    %v417 = vunpack.c.l.b16 %v377
    %v418 = vunpack.c.l.b16 %v378
    %v419 = vunpack.c.l.b16 %v379
    %v420 = vunpack.c.l.b16 %v380
    %v421 = vunpack.c.l.b16 %v381
    %v422 = vunpack.c.l.b16 %v382
    %v423 = vunpack.c.l.b16 %v383
    %v424 = vunpack.c.l.b16 %v384
    %v425 = vunpack.c.l.b16 %v385
    %v426 = vunpack.c.l.b16 %v386
    %v427 = vunpack.c.l.b16 %v387
    %v428 = vunpack.c.l.b16 %v388
    %v429 = vunpack.c.l.b16 %v389
    %v430 = vpack.c.b16 %v415, %v414
    %v431 = vpack.c.b16 %v417, %v416
    %v432 = vpack.c.b16 %v419, %v418
    %v433 = vpack.c.b16 %v421, %v420
    %v434 = vpack.c.b16 %v423, %v422
    %v435 = vpack.c.b16 %v425, %v424
    %v436 = vpack.c.b16 %v427, %v426
    %v437 = vpack.c.b16 %v429, %v428
    %446 = vmatprep.subr.bf16.mxu0 0
    %447 = vmatpush1.bf16.msra.mxu0 %v437
    %448 = vmatprep.subr.bf16.mxu0 0
    %449 = vmatpush1.bf16.msra.mxu0 %v436
    %450 = vmatprep.subr.bf16.mxu0 0
    %451 = vmatpush1.bf16.msra.mxu0 %v435
    %452 = vmatprep.subr.bf16.mxu0 0
    %453 = vmatpush1.bf16.msra.mxu0 %v434
    %454 = vmatprep.subr.bf16.mxu0 0
    %455 = vmatpush1.bf16.msra.mxu0 %v433
    %456 = vmatprep.subr.bf16.mxu0 0
    %457 = vmatpush1.bf16.msra.mxu0 %v432
    %458 = vmatprep.subr.bf16.mxu0 0
    %459 = vmatpush1.bf16.msra.mxu0 %v431
    %460 = vmatprep.subr.bf16.mxu0 0
    %461 = vmatpush1.bf16.msra.mxu0 %v430
    %462 = vmatprep.subr.bf16.mxu0 0
    %463 = vmatpush2.bf16.msra.mxu0 0
    %464 = vmatprep.subr.bf16.mxu0 0
    %465 = vmatpush2.bf16.msra.mxu0 0
    %466 = vmatprep.subr.bf16.mxu0 0
    %467 = vmatpush2.bf16.msra.mxu0 0
    %468 = vmatprep.subr.bf16.mxu0 0
    %469 = vmatpush2.bf16.msra.mxu0 0
    %470 = vmatprep.subr.bf16.mxu0 0
    %471 = vmatpush2.bf16.msra.mxu0 0
    %472 = vmatprep.subr.bf16.mxu0 0
    %473 = vmatpush2.bf16.msra.mxu0 0
    %474 = vmatprep.subr.bf16.mxu0 0
    %475 = vmatpush2.bf16.msra.mxu0 0
    %476 = vmatprep.subr.bf16.mxu0 0
    %477 = vmatpush2.bf16.msra.mxu0 0
    %478 = vmatprep.mubr.bf16.mxu0 0
    %479 = vmatmul.mubr.bf16.gmra.mxu0 %v391
    %v480 = vpop.f32.mrf.mxu0
    %v481 = vadd.f32 %v396, %v480
    %v482 = vpop.f32.mrf.mxu0
    %v483 = vpop.f32.mrf.mxu0
    %v484 = vpop.f32.mrf.mxu0
    %485 = vdwg.mxu0
    %486 = vst [vmem:[#allocation2] sm:$0xff] %v481
    // Predicated region
    $region38: #{mlp_forward.1} parent=1 // pred_check
      _
    $region39: #{mlp_forward.1} parent=1 // pred_check_branch
      %488 = sbr.rel (0) target = $region41
    $region40: #{mlp_forward.1} parent=1 // pred_region
      %s490 = ssub.s32 128, 128
      %491 = vsyncadd [#allocation3], %s490
      %s493 = sshll.u32 [#allocation2], 4
      %s494 = int_to_ptr.vmem [resolvable:$true] %s493
      %496 = dma.vmem_to_hbm [thread:$0]  %s494, 128, %s9, [#allocation3]
    $region41: #{mlp_forward.1} parent=1 // pred_fallthru
      _
    // Predicated region
    $region42: #{mlp_forward.1} parent=1 // pred_check
      _
    $region43: #{mlp_forward.1} parent=1 // pred_check_branch
      %498 = sbr.rel (0) target = $region45
    $region44: #{mlp_forward.1} parent=1 // pred_region
      %499 = dma.done [#allocation3], 128
    $region45: #{mlp_forward.1} parent=1 // pred_fallthru
      _
    %500 = vsyncpa [#allocation3], 1

</llo_original>
